<compile_context>
chip_gen: v5e
topology: v5e:2x2
jax: 0.10.0
libtpu: 0.0.40
codegen_flags: <defaults>
</compile_context>

<pallas_src>
import functools

import jax
import jax.numpy as jnp
from jax.experimental import pallas as pl
from jax.experimental.pallas import tpu as pltpu


def _color_correction_kernel(idx_ref, mats_ref, x_ref, o_ref, *, num_cameras):
    """One grid step = one (camera, row-tile).

    idx_ref  : SMEM (cam,) int32            scalar-prefetched camera indices
    mats_ref : SMEM (num_cameras*9,) f32    flat 3x3 matrices, M[k,c] at 9*cam + 3*k + c
    x_ref    : VMEM (1, TR, W*3)            interleaved image rows (native dtype)
    o_ref    : VMEM (1, TR, W*3)            corrected output rows
    """
    ci = pl.program_id(0)
    cam = jnp.clip(idx_ref[ci], 0, num_cameras - 1)   # bounds-safe gather
    base = cam * 9
    m = [mats_ref[base + i] for i in range(9)]        # m[3*k + c] == M[k, c]

    x = x_ref[0]                                      # (TR, L) in native dtype
    L = x.shape[-1]

    # ---- Hoisted per-lane coefficient rows: built ONCE per grid step at (1, L) ----
    lane = jax.lax.broadcasted_iota(jnp.int32, (1, L), dimension=1)
    ch = lane % 3
    is0 = ch == 0
    is1 = ch == 1
    zero = jnp.float32(0.0)

    def sel(v0, v1, v2):
        # Per-lane scalar select by output channel c = lane % 3 (f32 result).
        return jnp.where(is0, v0, jnp.where(is1, v1, v2))

    c_same = sel(m[0], m[4], m[8])     # x[j]   * M[c, c]
    c_p1 = sel(m[3], m[7], zero)       # x[j+1] * {M10, M21, 0  }[c]
    c_p2 = sel(m[6], zero, zero)       # x[j+2] * {M20, 0,   0  }[c]
    c_m1 = sel(zero, m[1], m[5])       # x[j-1] * {0,   M01, M12}[c]
    c_m2 = sel(zero, zero, m[2])       # x[j-2] * {0,   0,   M02}[c]

    # Roll the native-dtype tile (halves XLU work for bf16), cast each rolled
    # copy to f32 for the accumulate.  pltpu.roll(x, s)[j] == x[(j - s) mod L];
    # shifts of L-1 / L-2 give x[j+1] / x[j+2].  Wrap-around terms are zeroed
    # by the coefficient masks since the block spans the full W*3.
    out = x.astype(jnp.float32) * c_same
    out += pltpu.roll(x, L - 1, axis=1).astype(jnp.float32) * c_p1
    out += pltpu.roll(x, L - 2, axis=1).astype(jnp.float32) * c_p2
    out += pltpu.roll(x, 1, axis=1).astype(jnp.float32) * c_m1
    out += pltpu.roll(x, 2, axis=1).astype(jnp.float32) * c_m2

    o_ref[0] = out.astype(o_ref.dtype)


def _vmem_plan():
    """Generation-aware (target block bytes, vmem_limit_bytes).

    v7x has 64 MiB VMEM per TensorCore (vs 128 MiB on v5e/v6e), so cap the
    tile and the scoped-VMEM limit lower there.  Falls back to the small-chip
    (conservative) budget if hardware introspection is unavailable.
    """
    vmem_cap = 64 << 20                     # conservative default (v7x-class)
    try:
        info = pltpu.get_tpu_info()
        vmem_cap = int(getattr(info, "vmem_capacity_bytes", vmem_cap))
    except Exception:
        pass
    if vmem_cap <= (64 << 20):              # v7x-class
        return 4 << 20, min(48 << 20, (vmem_cap * 3) // 4)
    return 8 << 20, 96 << 20                # v5e / v6e (128 MiB VMEM)


def _choose_row_tile(h, lane_width, itemsize, cam, target_bytes, min_grid_steps=8):
    """Largest row tile that (a) divides h, (b) is a multiple of 8 (dense
    (8,128) vregs), (c) keeps one block under ~target_bytes, and (d) when
    possible leaves >= min_grid_steps total grid steps so both v7x
    TensorCores stay busy.  Falls back to the full height when h has no
    multiple-of-8 divisor (block then equals the full array dim)."""
    cands = [d for d in range(8, h + 1, 8) if h % d == 0]
    if not cands:
        return h
    fitting = [d for d in cands if d * lane_width * itemsize <= target_bytes]
    if not fitting:
        return min(cands)
    balanced = [d for d in fitting if cam * (h // d) >= min_grid_steps]
    return max(balanced) if balanced else max(fitting)


def learnable_color_correction(camera_indices, image, color_correction, *, row_tile=None):
    """Apply per-camera 3x3 color correction.

    Args:
      camera_indices:   (cam,) int indices into color_correction.
      image:            (cam, h, w, 3) float array (f32 or bf16).
      color_correction: (num_cameras, 3, 3) float parameter (kept in f32).
      row_tile:         optional explicit row tile (must divide h).

    Returns:
      (cam, h, w, 3) corrected image, same dtype as `image`.
    """
    cam, h, w, ch = image.shape
    if ch != 3:
        raise ValueError("image must have 3 channels")
    num_cameras = color_correction.shape[0]
    lane_w = w * 3

    x = image.reshape(cam, h, lane_w)                  # free reshape (merge trailing dims)
    mats = color_correction.astype(jnp.float32).reshape(num_cameras * 9)
    idx = camera_indices.astype(jnp.int32)

    target_block_bytes, vmem_limit = _vmem_plan()
    if row_tile is None:
        row_tile = _choose_row_tile(
            h, lane_w, jnp.dtype(image.dtype).itemsize, cam, target_block_bytes
        )
    assert h % row_tile == 0, "row_tile must divide image height"

    # Correctness invariant for the roll+mask decomposition: the block's last
    # dim must span the entire interleaved row (W*3) — never tile the lanes.
    block_shape = (1, row_tile, lane_w)
    assert block_shape[-1] == lane_w

    kernel = functools.partial(_color_correction_kernel, num_cameras=num_cameras)

    out = pl.pallas_call(
        kernel,
        out_shape=jax.ShapeDtypeStruct((cam, h, lane_w), image.dtype),
        grid_spec=pltpu.PrefetchScalarGridSpec(
            num_scalar_prefetch=1,
            grid=(cam, h // row_tile),
            in_specs=[
                # Whole flat matrix table, resident in SMEM for scalar reads.
                pl.BlockSpec(memory_space=pltpu.MemorySpace.SMEM),
                # Interleaved image row-tile, lane-dense last dim (full W*3).
                pl.BlockSpec(block_shape, lambda ci, ti, idx_ref: (ci, ti, 0)),
            ],
            out_specs=pl.BlockSpec(block_shape, lambda ci, ti, idx_ref: (ci, ti, 0)),
        ),
        compiler_params=pltpu.CompilerParams(
            dimension_semantics=("parallel", "parallel"),
            vmem_limit_bytes=vmem_limit,
        ),
    )(idx, mats, x)

    return out.reshape(cam, h, w, 3)


def _reference(camera_indices, image, color_correction):
    mats = color_correction[camera_indices].astype(jnp.float32)
    cam, h, w, _ = image.shape
    out = jnp.einsum(
        "bpk,bkc->bpc", image.reshape(cam, h * w, 3).astype(jnp.float32), mats
    )
    return out.reshape(cam, h, w, 3).astype(image.dtype)


if __name__ == "__main__":
    key = jax.random.PRNGKey(0)
    k_img, k_pert, k_img2, k_img4 = jax.random.split(key, 4)

    num_cameras = 4
    # eye(3) per camera (mirrors nn.Parameter init) + small deterministic perturbation.
    color_correction = (
        jnp.tile(jnp.eye(3, dtype=jnp.float32)[None], (num_cameras, 1, 1))
        + 0.05 * jax.random.normal(k_pert, (num_cameras, 3, 3), dtype=jnp.float32)
    )

    # Case 1: small f32 image, lane-dense width (w*3 = 384 lanes), auto tile.
    cam, h, w = 2, 16, 128
    image = jax.random.uniform(k_img, (cam, h, w, 3), dtype=jnp.float32)
    camera_indices = jnp.array([2, 0], dtype=jnp.int32)
    out = jax.block_until_ready(
        learnable_color_correction(camera_indices, image, color_correction)
    )
    ref = _reference(camera_indices, image, color_correction)
    assert out.shape == image.shape and out.dtype == image.dtype
    assert jnp.allclose(out, ref, atol=1e-5, rtol=1e-5)

    # Case 2: explicit small row tile -> multiple tiles per camera (grid = (2, 3)).
    cam2, h2, w2 = 2, 24, 128
    image2 = jax.random.uniform(k_img2, (cam2, h2, w2, 3), dtype=jnp.float32)
    camera_indices2 = jnp.array([1, 3], dtype=jnp.int32)
    out2 = jax.block_until_ready(
        learnable_color_correction(camera_indices2, image2, color_correction, row_tile=8)
    )
    ref2 = _reference(camera_indices2, image2, color_correction)
    assert jnp.allclose(out2, ref2, atol=1e-5, rtol=1e-5)

    # Case 3: bf16 image — native-dtype rolls, f32 matrices/accumulation, cast on store.
    image3 = image.astype(jnp.bfloat16)
    out3 = jax.block_until_ready(
        learnable_color_correction(camera_indices, image3, color_correction)
    )
    ref3 = _reference(camera_indices, image3, color_correction)
    assert out3.dtype == jnp.bfloat16
    assert jnp.allclose(
        out3.astype(jnp.float32), ref3.astype(jnp.float32), atol=2e-2, rtol=2e-2
    )

    # Case 4: taller image — exercises the megacore-balance tile selection
    # (auto row_tile keeps >= 8 total grid steps when divisors allow).
    cam4, h4, w4 = 2, 64, 128
    image4 = jax.random.uniform(k_img4, (cam4, h4, w4, 3), dtype=jnp.float32)
    camera_indices4 = jnp.array([3, 1], dtype=jnp.int32)
    out4 = jax.block_until_ready(
        learnable_color_correction(camera_indices4, image4, color_correction)
    )
    ref4 = _reference(camera_indices4, image4, color_correction)
    assert jnp.allclose(out4, ref4, atol=1e-5, rtol=1e-5)

    print("KERNEL_OK")
</pallas_src>

<mosaic_0001>
module attributes {stable_mosaic.version = 11 : i64} {
  func.func @_color_correction_kernel(%arg0: i32, %arg1: i32, %arg2: memref<2xi32, #tpu.memory_space<smem>>, %arg3: memref<36xf32, #tpu.memory_space<smem>>, %arg4: memref<1x16x384xf32, #tpu.memory_space<vmem>>, %arg5: memref<1x16x384xf32, #tpu.memory_space<vmem>>) attributes {dimension_semantics = [#tpu.dimension_semantics<parallel>, #tpu.dimension_semantics<parallel>], iteration_bounds = array<i64: 2, 1>, scalar_prefetch = 1 : i64, scratch_operands = 0 : i64, tpu.core_type = #tpu.core_type<tc>, window_params = [{transform_indices = @transform_0, window_bounds = array<i64: 36>}, {transform_indices = @transform_1, window_bounds = array<i64: 1, 16, 384>}, {transform_indices = @transform_2, window_bounds = array<i64: 1, 16, 384>}]} {
    %0 = arith.index_cast %arg0 : i32 to index
    %1 = memref.load %arg2[%0] : memref<2xi32, #tpu.memory_space<smem>>
    %c0_i32 = arith.constant 0 : i32
    %c3_i32 = arith.constant 3 : i32
    %2 = arith.maxsi %c0_i32, %1 : i32
    %3 = arith.minsi %c3_i32, %2 : i32
    %c9_i32 = arith.constant 9 : i32
    %4 = arith.muli %3, %c9_i32 : i32
    %c0_i32_0 = arith.constant 0 : i32
    %5 = arith.addi %4, %c0_i32_0 : i32
    %6 = arith.index_cast %5 : i32 to index
    %7 = memref.load %arg3[%6] : memref<36xf32, #tpu.memory_space<smem>>
    %c1_i32 = arith.constant 1 : i32
    %8 = arith.addi %4, %c1_i32 : i32
    %9 = arith.index_cast %8 : i32 to index
    %10 = memref.load %arg3[%9] : memref<36xf32, #tpu.memory_space<smem>>
    %c2_i32 = arith.constant 2 : i32
    %11 = arith.addi %4, %c2_i32 : i32
    %12 = arith.index_cast %11 : i32 to index
    %13 = memref.load %arg3[%12] : memref<36xf32, #tpu.memory_space<smem>>
    %c3_i32_1 = arith.constant 3 : i32
    %14 = arith.addi %4, %c3_i32_1 : i32
    %15 = arith.index_cast %14 : i32 to index
    %16 = memref.load %arg3[%15] : memref<36xf32, #tpu.memory_space<smem>>
    %c4_i32 = arith.constant 4 : i32
    %17 = arith.addi %4, %c4_i32 : i32
    %18 = arith.index_cast %17 : i32 to index
    %19 = memref.load %arg3[%18] : memref<36xf32, #tpu.memory_space<smem>>
    %c5_i32 = arith.constant 5 : i32
    %20 = arith.addi %4, %c5_i32 : i32
    %21 = arith.index_cast %20 : i32 to index
    %22 = memref.load %arg3[%21] : memref<36xf32, #tpu.memory_space<smem>>
    %c6_i32 = arith.constant 6 : i32
    %23 = arith.addi %4, %c6_i32 : i32
    %24 = arith.index_cast %23 : i32 to index
    %25 = memref.load %arg3[%24] : memref<36xf32, #tpu.memory_space<smem>>
    %c7_i32 = arith.constant 7 : i32
    %26 = arith.addi %4, %c7_i32 : i32
    %27 = arith.index_cast %26 : i32 to index
    %28 = memref.load %arg3[%27] : memref<36xf32, #tpu.memory_space<smem>>
    %c8_i32 = arith.constant 8 : i32
    %29 = arith.addi %4, %c8_i32 : i32
    %30 = arith.index_cast %29 : i32 to index
    %31 = memref.load %arg3[%30] : memref<36xf32, #tpu.memory_space<smem>>
    %c0 = arith.constant 0 : index
    %c0_2 = arith.constant 0 : index
    %c0_3 = arith.constant 0 : index
    %32 = vector.load %arg4[%c0, %c0_2, %c0_3] : memref<1x16x384xf32, #tpu.memory_space<vmem>>, vector<1x16x384xf32>
    %33 = vector.shape_cast %32 : vector<1x16x384xf32> to vector<16x384xf32>
    %34 = tpu.iota {dimensions = array<i32: 1>} : vector<1x384xi32>
    %c3_i32_4 = arith.constant 3 : i32
    %c0_i32_5 = arith.constant 0 : i32
    %35 = arith.cmpi eq, %c3_i32_4, %c0_i32_5 : i32
    %c1_i32_6 = arith.constant 1 : i32
    %36 = arith.select %35, %c1_i32_6, %c3_i32_4 : i32
    %37 = vector.broadcast %36 : i32 to vector<1x384xi32>
    %38 = arith.remsi %34, %37 : vector<1x384xi32>
    %c0_i32_7 = arith.constant 0 : i32
    %39 = vector.broadcast %c0_i32_7 : i32 to vector<1x384xi32>
    %40 = arith.cmpi ne, %38, %39 : vector<1x384xi32>
    %c0_i32_8 = arith.constant 0 : i32
    %41 = vector.broadcast %c0_i32_8 : i32 to vector<1x384xi32>
    %42 = arith.cmpi slt, %38, %41 : vector<1x384xi32>
    %c0_i32_9 = arith.constant 0 : i32
    %43 = arith.cmpi slt, %36, %c0_i32_9 : i32
    %44 = vector.broadcast %43 : i1 to vector<1x384xi1>
    %45 = vector.broadcast %44 : vector<1x384xi1> to vector<1x384xi1>
    %46 = arith.xori %42, %45 : vector<1x384xi1>
    %47 = arith.andi %46, %40 : vector<1x384xi1>
    %48 = vector.broadcast %36 : i32 to vector<1x384xi32>
    %49 = arith.addi %38, %48 : vector<1x384xi32>
    %50 = arith.select %47, %49, %38 : vector<1x384xi1>, vector<1x384xi32>
    %c0_i32_10 = arith.constant 0 : i32
    %51 = vector.broadcast %c0_i32_10 : i32 to vector<1x384xi32>
    %52 = arith.cmpi eq, %50, %51 : vector<1x384xi32>
    %c1_i32_11 = arith.constant 1 : i32
    %53 = vector.broadcast %c1_i32_11 : i32 to vector<1x384xi32>
    %54 = arith.cmpi eq, %50, %53 : vector<1x384xi32>
    %55 = vector.broadcast %19 : f32 to vector<1x384xf32>
    %56 = vector.broadcast %31 : f32 to vector<1x384xf32>
    %57 = arith.select %54, %55, %56 : vector<1x384xi1>, vector<1x384xf32>
    %58 = vector.broadcast %7 : f32 to vector<1x384xf32>
    %59 = arith.select %52, %58, %57 : vector<1x384xi1>, vector<1x384xf32>
    %cst = arith.constant 0.000000e+00 : f32
    %60 = vector.broadcast %28 : f32 to vector<1x384xf32>
    %61 = vector.broadcast %cst : f32 to vector<1x384xf32>
    %62 = arith.select %54, %60, %61 : vector<1x384xi1>, vector<1x384xf32>
    %63 = vector.broadcast %16 : f32 to vector<1x384xf32>
    %64 = arith.select %52, %63, %62 : vector<1x384xi1>, vector<1x384xf32>
    %cst_12 = arith.constant 0.000000e+00 : f32
    %cst_13 = arith.constant 0.000000e+00 : f32
    %65 = vector.broadcast %cst_12 : f32 to vector<1x384xf32>
    %66 = vector.broadcast %cst_13 : f32 to vector<1x384xf32>
    %67 = arith.select %54, %65, %66 : vector<1x384xi1>, vector<1x384xf32>
    %68 = vector.broadcast %25 : f32 to vector<1x384xf32>
    %69 = arith.select %52, %68, %67 : vector<1x384xi1>, vector<1x384xf32>
    %70 = vector.broadcast %10 : f32 to vector<1x384xf32>
    %71 = vector.broadcast %22 : f32 to vector<1x384xf32>
    %72 = arith.select %54, %70, %71 : vector<1x384xi1>, vector<1x384xf32>
    %cst_14 = arith.constant 0.000000e+00 : f32
    %73 = vector.broadcast %cst_14 : f32 to vector<1x384xf32>
    %74 = arith.select %52, %73, %72 : vector<1x384xi1>, vector<1x384xf32>
    %cst_15 = arith.constant 0.000000e+00 : f32
    %75 = vector.broadcast %cst_15 : f32 to vector<1x384xf32>
    %76 = vector.broadcast %13 : f32 to vector<1x384xf32>
    %77 = arith.select %54, %75, %76 : vector<1x384xi1>, vector<1x384xf32>
    %cst_16 = arith.constant 0.000000e+00 : f32
    %78 = vector.broadcast %cst_16 : f32 to vector<1x384xf32>
    %79 = arith.select %52, %78, %77 : vector<1x384xi1>, vector<1x384xf32>
    %80 = vector.broadcast %59 : vector<1x384xf32> to vector<16x384xf32>
    %81 = arith.mulf %33, %80 : vector<16x384xf32>
    %c383_i32 = arith.constant 383 : i32
    %82 = tpu.dynamic_rotate %33 by %c383_i32 dim 1 : vector<16x384xf32>, i32 -> vector<16x384xf32>
    %83 = vector.broadcast %64 : vector<1x384xf32> to vector<16x384xf32>
    %84 = arith.mulf %82, %83 : vector<16x384xf32>
    %85 = arith.addf %81, %84 : vector<16x384xf32>
    %c382_i32 = arith.constant 382 : i32
    %86 = tpu.dynamic_rotate %33 by %c382_i32 dim 1 : vector<16x384xf32>, i32 -> vector<16x384xf32>
    %87 = vector.broadcast %69 : vector<1x384xf32> to vector<16x384xf32>
    %88 = arith.mulf %86, %87 : vector<16x384xf32>
    %89 = arith.addf %85, %88 : vector<16x384xf32>
    %c1_i32_17 = arith.constant 1 : i32
    %90 = tpu.dynamic_rotate %33 by %c1_i32_17 dim 1 : vector<16x384xf32>, i32 -> vector<16x384xf32>
    %91 = vector.broadcast %74 : vector<1x384xf32> to vector<16x384xf32>
    %92 = arith.mulf %90, %91 : vector<16x384xf32>
    %93 = arith.addf %89, %92 : vector<16x384xf32>
    %c2_i32_18 = arith.constant 2 : i32
    %94 = tpu.dynamic_rotate %33 by %c2_i32_18 dim 1 : vector<16x384xf32>, i32 -> vector<16x384xf32>
    %95 = vector.broadcast %79 : vector<1x384xf32> to vector<16x384xf32>
    %96 = arith.mulf %94, %95 : vector<16x384xf32>
    %97 = arith.addf %93, %96 : vector<16x384xf32>
    %c0_19 = arith.constant 0 : index
    %c0_20 = arith.constant 0 : index
    %c0_21 = arith.constant 0 : index
    %98 = vector.load %arg5[%c0_19, %c0_20, %c0_21] : memref<1x16x384xf32, #tpu.memory_space<vmem>>, vector<1x16x384xf32>
    %99 = vector.shape_cast %98 : vector<1x16x384xf32> to vector<16x384xf32>
    %100 = vector.shape_cast %97 : vector<16x384xf32> to vector<1x16x384xf32>
    tpu.vector_store %arg5[%c0_19, %c0_20, %c0_21], %100 {strides = array<i32>} : memref<1x16x384xf32, #tpu.memory_space<vmem>>, vector<1x16x384xf32>,
    return
  }
  func.func @transform_0(%arg0: i32, %arg1: i32, %arg2: memref<2xi32, #tpu.memory_space<smem>>) -> i32 {
    %c0_i32 = arith.constant 0 : i32
    %c0_i32_0 = arith.constant 0 : i32
    return %c0_i32 : i32
  }
  func.func @transform_1(%arg0: i32, %arg1: i32, %arg2: memref<2xi32, #tpu.memory_space<smem>>) -> (i32, i32, i32) {
    %c0_i32 = arith.constant 0 : i32
    %c0_i32_0 = arith.constant 0 : i32
    return %arg0, %arg1, %c0_i32 : i32, i32, i32
  }
  func.func @transform_2(%arg0: i32, %arg1: i32, %arg2: memref<2xi32, #tpu.memory_space<smem>>) -> (i32, i32, i32) {
    %c0_i32 = arith.constant 0 : i32
    %c0_i32_0 = arith.constant 0 : i32
    return %arg0, %arg1, %c0_i32 : i32, i32, i32
  }
}

</mosaic_0001>

<llo_original>
// kernel: tpu_custom_call.1
$region0: #{tpu_custom_call.1}
  #allocation0 [shape = 'u32[]', space=smem, size = 0x4, offset = 0x4, fixed_abs, tag = 'smem constant byte address 0x4 - core index']
  #allocation1 [shape = 'u32[72,128]{1,0:T(1,128)}', space=vmem, size = 0x9000, scoped, tag = 'internal scratch']
  #allocation2 [shape = 's32[1]{0}', space=sflag, size = 0x4, scoped, tag = 'scoped memory for tpu_custom_call.1']
  #allocation3 [shape = 'u8[512]{0}', space=smem, size = 0x200, scoped, tag = 'prefetched SMEM operand 0']
  %s0 = inlined_call_operand.hbm [shape: s32[2], index: 0, kind: input, shape index: {}]
  %s1 = inlined_call_operand.hbm [shape: f32[36], index: 1, kind: input, shape index: {}]
  %s2 = inlined_call_operand.hbm [shape: f32[2,16,384], index: 2, kind: input, shape index: {}]
  %s3 = inlined_call_operand.hbm [shape: f32[2,16,384], index: 3, kind: output, shape index: {}]
  %s4 = sld [smem:[#allocation0]]
  $region49: #{tpu_custom_call.1} parent=0
    _
  %s6 = ssub.s32 1, %s4
  %s7 = scalar_select 0, %s6, %s4
  %s9 = sshll.u32 %s0, 4
  %s10 = int_to_ptr.hbm [resolvable:$true] %s9
  %12 = dma.hbm_to_smem %s10, 16, [#allocation3], [#allocation2]
  %14 = dma.done [#allocation2], 16
  %15 = sfence
  $region1: #{tpu_custom_call.1} parent=0
    #allocation4 [shape = 'u8[512]{0}', space=smem, size = 0x200, scoped, tag = 'input window, operand 1, single buffered']
    #allocation5 [shape = 's32[2]{0}', space=sflag, size = 0x8, scoped, tag = 'scoped memory for tpu_custom_call.1']
    #allocation6 [shape = 's32[2]{0}', space=sflag, size = 0x8, scoped, tag = 'scoped memory for tpu_custom_call.1']
    #allocation7 [shape = 's32[2]{0}', space=sflag, size = 0x8, scoped, tag = 'scoped memory for tpu_custom_call.1']
    #allocation8 [shape = 'u8[49152]{0}', space=vmem, size = 0xc000, scoped, tag = 'input window, operand 2']
    #allocation9 [shape = 'u8[49152]{0}', space=vmem, size = 0xc000, scoped, tag = 'output window, operand 0']
    %16 = vsyncpa [#allocation7], 0
    %17 = vsyncpa [#allocation5], 0
    %s18 = scalar_lea.sflag [#allocation5], 1
    %19 = vsyncpa %s18, 0
    %20 = vsyncpa [#allocation6], 0
    %s21 = scalar_lea.sflag [#allocation6], 1
    %22 = vsyncpa %s21, 0
    loop: start=0, step=1, limit=4
    $region2: #{tpu_custom_call.1} parent=1 // loop_pre_header
      _
    $region3: #{tpu_custom_call.1} parent=1 // loop_header
      %s24 = sphi 0, %s28
      %p25 = scmp.ge.s32.totalorder %s24, 4
      %s31 = sphi 0, %s43
      %s32 = sphi 0, %s39
      %s33 = sphi 0, %s31
      %s34 = sphi 0, %s32
      %s35 = sphi 0, %s33
      %s36 = sphi 0, %s34
      %s44 = sphi 0, %s44
      %s46 = sphi 0, %s44
      %s47 = sphi 0, %s46
      %s61 = sphi 0, %s47
      %s69 = sphi 0, %s71
      %s72 = sphi 0, %s69
      %s73 = sphi 0, %s72
      %s89 = sphi 0, %s73
      %s97 = sphi 0, %s99
      %s100 = sphi 0, %s97
      %s101 = sphi 0, %s100
      %s117 = sphi 0, %s101
    $region4: #{tpu_custom_call.1} parent=1 // loop_header_branch
      %27 = sbr.rel (%p25) target = $region8
    $region5: #{tpu_custom_call.1} parent=1 // loop_body
      %s29 = ssub.s32 %s24, 1
      %s30 = ssub.s32 %s24, 2
      %s37 = sadd.s32 1, %s32
      %p38 = scmp.ge.s32.totalorder %s37, 1
      %s39 = scalar_select %p38, 0, %s37
      %s40 = sadd.s32 1, %s31
      %s41 = scalar_select %p38, %s40, %s31
      %p42 = scmp.ge.s32.totalorder %s41, 2
      %s43 = scalar_select %p42, 0, %s41
      %s45 = sadd.s32 %s44, 1
      %p48 = scmp.eq.s32.totalorder %s24, 1
      %p49 = scmp.ne.s32.totalorder %s44, %s46
      %p50 = scmp.eq.s32.totalorder %s24, 0
      %p51 = por %p49, %p50
      %p52 = scmp.ne.s32.totalorder %s44, %s46
      %p53 = scmp.eq.s32.totalorder %s29, 1
      %p54 = por %p52, %p53
      %p55 = scmp.ne.s32.totalorder %s46, %s47
      %p56 = scmp.eq.s32.totalorder %s29, 0
      %p57 = por %p55, %p56
      %p58 = scmp.ne.s32.totalorder %s46, %s47
      %p59 = scmp.eq.s32.totalorder %s30, 1
      %p60 = por %p58, %p59
      %p62 = scmp.ne.s32.totalorder %s47, %s61
      %p63 = scmp.eq.s32.totalorder %s30, 0
      %p64 = por %p62, %p63
      %s65 = ssub.s32 %s31, %s43
      %s66 = ssub.s32 %s32, %s39
      %s67 = sor.u32 %s65, %s66
      %p68 = scmp.eq.s32.totalorder %s67, 0
      %s70 = sadd.s32 %s69, 1
      %s71 = scalar_select %p68, %s69, %s70
      %p74 = pneg %p68
      %p75 = scmp.eq.s32.totalorder %s24, 1
      %p76 = por %p74, %p75
      %p77 = scmp.ne.s32.totalorder %s69, %s72
      %p78 = scmp.eq.s32.totalorder %s24, 0
      %p79 = por %p77, %p78
      %p80 = scmp.ne.s32.totalorder %s69, %s72
      %p81 = scmp.eq.s32.totalorder %s29, 1
      %p82 = por %p80, %p81
      %p83 = scmp.ne.s32.totalorder %s72, %s73
      %p84 = scmp.eq.s32.totalorder %s29, 0
      %p85 = por %p83, %p84
      %p86 = scmp.ne.s32.totalorder %s72, %s73
      %p87 = scmp.eq.s32.totalorder %s30, 1
      %p88 = por %p86, %p87
      %p90 = scmp.ne.s32.totalorder %s73, %s89
      %p91 = scmp.eq.s32.totalorder %s30, 0
      %p92 = por %p90, %p91
      %s93 = ssub.s32 %s31, %s43
      %s94 = ssub.s32 %s32, %s39
      %s95 = sor.u32 %s93, %s94
      %p96 = scmp.eq.s32.totalorder %s95, 0
      %s98 = sadd.s32 %s97, 1
      %s99 = scalar_select %p96, %s97, %s98
      %p102 = pneg %p96
      %p103 = scmp.eq.s32.totalorder %s24, 1
      %p104 = por %p102, %p103
      %p105 = scmp.ne.s32.totalorder %s97, %s100
      %p106 = scmp.eq.s32.totalorder %s24, 0
      %p107 = por %p105, %p106
      %p108 = scmp.ne.s32.totalorder %s97, %s100
      %p109 = scmp.eq.s32.totalorder %s29, 1
      %p110 = por %p108, %p109
      %p111 = scmp.ne.s32.totalorder %s100, %s101
      %p112 = scmp.eq.s32.totalorder %s29, 0
      %p113 = por %p111, %p112
      %p114 = scmp.ne.s32.totalorder %s100, %s101
      %p115 = scmp.eq.s32.totalorder %s30, 1
      %p116 = por %p114, %p115
      %p118 = scmp.ne.s32.totalorder %s101, %s117
      %p119 = scmp.eq.s32.totalorder %s30, 0
      %p120 = por %p118, %p119
      %p121 = scmp.le.s32.totalorder 1, %s24
      %p122 = scmp.lt.s32.totalorder %s24, 3
      %p123 = pnand %p121, %p122
      %p124 = pneg %p123
      // Predicated region
      $region9: #{tpu_custom_call.1} parent=5 // pred_check
        _
      $region10: #{tpu_custom_call.1} parent=5 // pred_check_branch
        %126 = sbr.rel (%p123) target = $region12
      $region11: #{tpu_custom_call.1} parent=5 // pred_region
        %s127 = ssub.s32 %s24, 1
        // Predicated region
        $region13: #{tpu_custom_call.1} parent=11 // pred_check
          %p128 = pneg %p57
        $region14: #{tpu_custom_call.1} parent=11 // pred_check_branch
          %130 = sbr.rel (%p128) target = $region16
        $region15: #{tpu_custom_call.1} parent=11 // pred_region
          %132 = vsyncadd [#allocation7], 0
          %s134 = sshll.u32 %s1, 4
          %s135 = int_to_ptr.hbm [resolvable:$true] %s134
          %137 = dma.hbm_to_smem %s135, 16, [#allocation4], [#allocation7]
        $region16: #{tpu_custom_call.1} parent=11 // pred_fallthru
          _
      $region12: #{tpu_custom_call.1} parent=5 // pred_fallthru
        _
      %p138 = scmp.lt.s32.totalorder %s24, 2
      // Predicated region
      $region17: #{tpu_custom_call.1} parent=5 // pred_check
        %p139 = pneg %p138
      $region18: #{tpu_custom_call.1} parent=5 // pred_check_branch
        %141 = sbr.rel (%p139) target = $region20
      $region19: #{tpu_custom_call.1} parent=5 // pred_region
        // Predicated region
        $region21: #{tpu_custom_call.1} parent=19 // pred_check
          %p142 = pneg %p79
        $region22: #{tpu_custom_call.1} parent=19 // pred_check_branch
          %144 = sbr.rel (%p142) target = $region24
        $region23: #{tpu_custom_call.1} parent=19 // pred_region
          %s145 = sand.u32 %s69, 1
          %s146 = scalar_lea.sflag [#allocation5], %s145
          %s147 = sand.u32 %s69, 1
          %s148 = smul.addr %s147, 48
          %s149 = scalar_lea.vmem [#allocation8], %s148
          %s150 = smul.u32 2, %s32
          %152 = vsyncadd %s146, 0
          %s153 = smul.addr %s150, 3
          %s154 = smul.addr %s31, 6
          %s155 = sadd.s32 %s153, %s154
          %s156 = smul.addr %s155, 8
          %s157 = scalar_lea.hbm %s2, %s156
          %s158 = sshll.u32 %s157, 4
          %s159 = int_to_ptr.hbm [resolvable:$true] %s158
          %s160 = sshll.u32 %s149, 4
          %s161 = int_to_ptr.vmem [resolvable:$true] %s160
          %166 = dma.hbm_to_vmem [thread:$0]  %s159, 768, %s161, %s146, 384, 384, 24
        $region24: #{tpu_custom_call.1} parent=19 // pred_fallthru
          _
      $region20: #{tpu_custom_call.1} parent=5 // pred_fallthru
        _
      %p167 = scmp.le.s32.totalorder 1, %s24
      %p168 = scmp.lt.s32.totalorder %s24, 3
      %p169 = pnand %p167, %p168
      %p170 = pneg %p169
      // Predicated region
      $region25: #{tpu_custom_call.1} parent=5 // pred_check
        _
      $region26: #{tpu_custom_call.1} parent=5 // pred_check_branch
        %172 = sbr.rel (%p169) target = $region28
      $region27: #{tpu_custom_call.1} parent=5 // pred_region
        %s173 = ssub.s32 %s24, 1
        // Predicated region
        $region29: #{tpu_custom_call.1} parent=27 // pred_check
          %p174 = pneg %p57
        $region30: #{tpu_custom_call.1} parent=27 // pred_check_branch
          %176 = sbr.rel (%p174) target = $region32
        $region31: #{tpu_custom_call.1} parent=27 // pred_region
          %178 = dma.done [#allocation7], 16
        $region32: #{tpu_custom_call.1} parent=27 // pred_fallthru
          _
        %s179 = sand.u32 %s72, 1
        %s180 = scalar_lea.sflag [#allocation5], %s179
        %s181 = sand.u32 %s72, 1
        %s182 = smul.addr %s181, 48
        %s183 = scalar_lea.vmem [#allocation8], %s182
        // Predicated region
        $region33: #{tpu_custom_call.1} parent=27 // pred_check
          %p184 = pneg %p85
        $region34: #{tpu_custom_call.1} parent=27 // pred_check_branch
          %186 = sbr.rel (%p184) target = $region36
        $region35: #{tpu_custom_call.1} parent=27 // pred_region
          %188 = dma.done %s180, 768
        $region36: #{tpu_custom_call.1} parent=27 // pred_fallthru
          _
        %189 = sfence
        %p190 = pneg %p57
        %p191 = pneg %p54
        %s192 = sand.u32 %s72, 1
        %s193 = scalar_lea.sflag [#allocation5], %s192
        %s194 = sand.u32 %s72, 1
        %s195 = smul.addr %s194, 48
        %s196 = scalar_lea.vmem [#allocation8], %s195
        %p197 = pneg %p85
        %p198 = pneg %p82
        %p199 = pneg %p113
        %p200 = pneg %p110
        %s201 = sand.u32 %s100, 1
        %s202 = scalar_lea.sflag [#allocation6], %s201
        %s203 = sand.u32 %s100, 1
        %s204 = smul.addr %s203, 48
        %s205 = scalar_lea.vmem [#allocation9], %s204
        %s206 = smul.u32 2, %s34
        %s207 = smul.u32 2, %s34
        %s208 = sld [smem:[#allocation3 + %s33]]
        %p209 = scmp.gt.s32.totalorder %s208, 0
        %s210 = scalar_select %p209, %s208, 0
        %p211 = scmp.lt.s32.totalorder %s210, 3
        %s212 = scalar_select %p211, %s210, 3
        %s213 = smul.u32 %s212, 9
        %s214 = sld [smem:[#allocation4 + %s213]]
        %s215 = sadd.s32 %s213, 1
        %s216 = sld [smem:[#allocation4 + %s215]]
        %s217 = sadd.s32 %s213, 2
        %s218 = sld [smem:[#allocation4 + %s217]]
        %s219 = sadd.s32 %s213, 3
        %s220 = sld [smem:[#allocation4 + %s219]]
        %s221 = sadd.s32 %s213, 4
        %s222 = sld [smem:[#allocation4 + %s221]]
        %s223 = sadd.s32 %s213, 5
        %s224 = sld [smem:[#allocation4 + %s223]]
        %s225 = sadd.s32 %s213, 6
        %s226 = sld [smem:[#allocation4 + %s225]]
        %s227 = sadd.s32 %s213, 7
        %s228 = sld [smem:[#allocation4 + %s227]]
        %s229 = sadd.s32 %s213, 8
        %s230 = sld [smem:[#allocation4 + %s229]]
        %v231 = vld [vmem:[%s183] sm:$0xff]
        %v232 = vld [vmem:[%s183 + $0x8] sm:$0xff]
        %v233 = vld [vmem:[%s183 + $0x10] sm:$0xff]
        %v234 = vld [vmem:[%s183 + $0x18] sm:$0xff]
        %v235 = vld [vmem:[%s183 + $0x20] sm:$0xff]
        %v236 = vld [vmem:[%s183 + $0x28] sm:$0xff]
        %v237 = vlaneseq
        %v238 = vand.u32 %v237, 127
        %v239 = vadd.s32 %v238, 128
        %v240 = vadd.s32 %v238, 256
        %vm241 = vcmp.lt.s32.totalorder %v238, 0
        %v242 = vsub.s32 0, %v238
        %v243 = vsel %vm241, %v242, %v238
        %v244 = vand.u32 %v243, 65535
        %v245 = vshrl.u32 %v243, 16
        %v247 = vmul.u32 %v244, 43691
        %v248 = vmul.u32 %v244, 43690
        %v249 = vmul.u32 %v245, 43691
        %v250 = vmul.u32 %v245, 43690
        %v251 = vshll.u32 %v248, 16
        %v252 = vshrl.u32 %v248, 16
        %v253 = vshll.u32 %v249, 16
        %v254 = vshrl.u32 %v249, 16
        %vm255 = vc.u32 %v247, %v251
        %v256 = vsel %vm255, 1, 0
        %v257 = vadd.s32 %v247, %v251
        %v258 = vadd.s32 %v250, %v256
        %vm259 = vc.u32 %v257, %v253
        %v260 = vsel %vm259, 1, 0
        %v261 = vadd.s32 %v257, %v253
        %v262 = vadd.s32 %v258, %v260
        %v263 = vadd.s32 %v262, %v252
        %v264 = vadd.s32 %v263, %v254
        %v265 = vshrl.u32 %v264, 1
        %v266 = vmul.u32 %v265, 3
        %v267 = vsub.s32 %v243, %v266
        %v268 = vsub.s32 0, %v267
        %v269 = vsel %vm241, %v268, %v267
        %vm270 = vcmp.lt.s32.totalorder %v239, 0
        %v271 = vsub.s32 0, %v239
        %v272 = vsel %vm270, %v271, %v239
        %v273 = vand.u32 %v272, 65535
        %v274 = vshrl.u32 %v272, 16
        %v276 = vmul.u32 %v273, 43691
        %v277 = vmul.u32 %v273, 43690
        %v278 = vmul.u32 %v274, 43691
        %v279 = vmul.u32 %v274, 43690
        %v280 = vshll.u32 %v277, 16
        %v281 = vshrl.u32 %v277, 16
        %v282 = vshll.u32 %v278, 16
        %v283 = vshrl.u32 %v278, 16
        %vm284 = vc.u32 %v276, %v280
        %v285 = vsel %vm284, 1, 0
        %v286 = vadd.s32 %v276, %v280
        %v287 = vadd.s32 %v279, %v285
        %vm288 = vc.u32 %v286, %v282
        %v289 = vsel %vm288, 1, 0
        %v290 = vadd.s32 %v286, %v282
        %v291 = vadd.s32 %v287, %v289
        %v292 = vadd.s32 %v291, %v281
        %v293 = vadd.s32 %v292, %v283
        %v294 = vshrl.u32 %v293, 1
        %v295 = vmul.u32 %v294, 3
        %v296 = vsub.s32 %v272, %v295
        %v297 = vsub.s32 0, %v296
        %v298 = vsel %vm270, %v297, %v296
        %vm299 = vcmp.lt.s32.totalorder %v240, 0
        %v300 = vsub.s32 0, %v240
        %v301 = vsel %vm299, %v300, %v240
        %v302 = vand.u32 %v301, 65535
        %v303 = vshrl.u32 %v301, 16
        %v305 = vmul.u32 %v302, 43691
        %v306 = vmul.u32 %v302, 43690
        %v307 = vmul.u32 %v303, 43691
        %v308 = vmul.u32 %v303, 43690
        %v309 = vshll.u32 %v306, 16
        %v310 = vshrl.u32 %v306, 16
        %v311 = vshll.u32 %v307, 16
        %v312 = vshrl.u32 %v307, 16
        %vm313 = vc.u32 %v305, %v309
        %v314 = vsel %vm313, 1, 0
        %v315 = vadd.s32 %v305, %v309
        %v316 = vadd.s32 %v308, %v314
        %vm317 = vc.u32 %v315, %v311
        %v318 = vsel %vm317, 1, 0
        %v319 = vadd.s32 %v315, %v311
        %v320 = vadd.s32 %v316, %v318
        %v321 = vadd.s32 %v320, %v310
        %v322 = vadd.s32 %v321, %v312
        %v323 = vshrl.u32 %v322, 1
        %v324 = vmul.u32 %v323, 3
        %v325 = vsub.s32 %v301, %v324
        %v326 = vsub.s32 0, %v325
        %v327 = vsel %vm299, %v326, %v325
        %vm328 = vcmp.ne.s32.totalorder %v269, 0
        %vm329 = vcmp.ne.s32.totalorder %v298, 0
        %vm330 = vcmp.ne.s32.totalorder %v327, 0
        %vm331 = vcmp.lt.s32.totalorder %v269, 0
        %vm332 = vcmp.lt.s32.totalorder %v298, 0
        %vm333 = vcmp.lt.s32.totalorder %v327, 0
        %vm334 = vmand %vm331, %vm328
        %vm335 = vmand %vm332, %vm329
        %vm336 = vmand %vm333, %vm330
        %v337 = vadd.s32 %v269, 3
        %v338 = vadd.s32 %v298, 3
        %v339 = vadd.s32 %v327, 3
        %v340 = vsel %vm334, %v337, %v269
        %v341 = vsel %vm335, %v338, %v298
        %v342 = vsel %vm336, %v339, %v327
        %vm343 = vcmp.eq.s32.totalorder %v340, 0
        %vm344 = vcmp.eq.s32.totalorder %v341, 0
        %vm345 = vcmp.eq.s32.totalorder %v342, 0
        %vm346 = vcmp.eq.s32.totalorder %v340, 1
        %vm347 = vcmp.eq.s32.totalorder %v341, 1
        %vm348 = vcmp.eq.s32.totalorder %v342, 1
        %v349 = vstv %s222
        %v350 = vstv %s230
        %v351 = vsel %vm346, %v349, %v350
        %v352 = vsel %vm347, %v349, %v350
        %v353 = vsel %vm348, %v349, %v350
        %v354 = vstv %s214
        %v355 = vsel %vm343, %v354, %v351
        %v356 = vsel %vm344, %v354, %v352
        %v357 = vsel %vm345, %v354, %v353
        %v358 = vstv %s228
        %v359 = vsel %vm346, %v358, 0.0
        %v360 = vsel %vm347, %v358, 0.0
        %v361 = vsel %vm348, %v358, 0.0
        %v362 = vstv %s220
        %v363 = vsel %vm343, %v362, %v359
        %v364 = vsel %vm344, %v362, %v360
        %v365 = vsel %vm345, %v362, %v361
        %v366 = vstv %s226
        %v367 = vsel %vm343, %v366, 0.0
        %v368 = vsel %vm344, %v366, 0.0
        %v369 = vsel %vm345, %v366, 0.0
        %v370 = vstv %s216
        %v371 = vstv %s224
        %v372 = vsel %vm346, %v370, %v371
        %v373 = vsel %vm347, %v370, %v371
        %v374 = vsel %vm348, %v370, %v371
        %v375 = vsel %vm343, 0.0, %v372
        %v376 = vsel %vm344, 0.0, %v373
        %v377 = vsel %vm345, 0.0, %v374
        %v378 = vstv %s218
        %v379 = vsel %vm346, 0.0, %v378
        %v380 = vsel %vm347, 0.0, %v378
        %v381 = vsel %vm348, 0.0, %v378
        %v382 = vsel %vm343, 0.0, %v379
        %v383 = vsel %vm344, 0.0, %v380
        %v384 = vsel %vm345, 0.0, %v381
        %v385 = vmul.f32 %v231, %v355
        %v386 = vmul.f32 %v232, %v356
        %v387 = vmul.f32 %v233, %v357
        %v388 = vmul.f32 %v234, %v355
        %v389 = vmul.f32 %v235, %v356
        %v390 = vmul.f32 %v236, %v357
        %391 = vrot.lane.b32.xlu0 %v231, 127
        %v392 = vpop.permute.xlu0 %391
        %393 = vrot.lane.b32.xlu0 %v234, 127
        %v394 = vpop.permute.xlu0 %393
        %395 = vrot.lane.b32.xlu0 %v232, 127
        %v396 = vpop.permute.xlu0 %395
        %397 = vrot.lane.b32.xlu0 %v235, 127
        %v398 = vpop.permute.xlu0 %397
        %399 = vrot.lane.b32.xlu0 %v233, 127
        %v400 = vpop.permute.xlu0 %399
        %401 = vrot.lane.b32.xlu0 %v236, 127
        %v402 = vpop.permute.xlu0 %401
        %vm403 = vcmp.lt.s32.totalorder %v238, 127
        %v404 = vsel %vm403, %v396, %v400
        %v405 = vsel %vm403, %v398, %v402
        %v406 = vsel %vm403, %v392, %v396
        %v407 = vsel %vm403, %v394, %v398
        %v408 = vsel %vm403, %v400, %v392
        %v409 = vsel %vm403, %v402, %v394
        %v410 = vmul.f32 %v406, %v363
        %v411 = vmul.f32 %v404, %v364
        %v412 = vmul.f32 %v408, %v365
        %v413 = vmul.f32 %v407, %v363
        %v414 = vmul.f32 %v405, %v364
        %v415 = vmul.f32 %v409, %v365
        %v416 = vadd.f32 %v385, %v410
        %v417 = vadd.f32 %v386, %v411
        %v418 = vadd.f32 %v387, %v412
        %v419 = vadd.f32 %v388, %v413
        %v420 = vadd.f32 %v389, %v414
        %v421 = vadd.f32 %v390, %v415
        %422 = vrot.lane.b32.xlu0 %v231, 126
        %v423 = vpop.permute.xlu0 %422
        %424 = vrot.lane.b32.xlu0 %v234, 126
        %v425 = vpop.permute.xlu0 %424
        %426 = vrot.lane.b32.xlu0 %v232, 126
        %v427 = vpop.permute.xlu0 %426
        %428 = vrot.lane.b32.xlu0 %v235, 126
        %v429 = vpop.permute.xlu0 %428
        %430 = vrot.lane.b32.xlu0 %v233, 126
        %v431 = vpop.permute.xlu0 %430
        %432 = vrot.lane.b32.xlu0 %v236, 126
        %v433 = vpop.permute.xlu0 %432
        %vm434 = vcmp.lt.s32.totalorder %v238, 126
        %v435 = vsel %vm434, %v427, %v431
        %v436 = vsel %vm434, %v429, %v433
        %v437 = vsel %vm434, %v423, %v427
        %v438 = vsel %vm434, %v425, %v429
        %v439 = vsel %vm434, %v431, %v423
        %v440 = vsel %vm434, %v433, %v425
        %v441 = vmul.f32 %v437, %v367
        %v442 = vmul.f32 %v435, %v368
        %v443 = vmul.f32 %v439, %v369
        %v444 = vmul.f32 %v438, %v367
        %v445 = vmul.f32 %v436, %v368
        %v446 = vmul.f32 %v440, %v369
        %v447 = vadd.f32 %v416, %v441
        %v448 = vadd.f32 %v417, %v442
        %v449 = vadd.f32 %v418, %v443
        %v450 = vadd.f32 %v419, %v444
        %v451 = vadd.f32 %v420, %v445
        %v452 = vadd.f32 %v421, %v446
        %453 = vrot.lane.b32.xlu0 %v231, 1
        %v454 = vpop.permute.xlu0 %453
        %455 = vrot.lane.b32.xlu0 %v234, 1
        %v456 = vpop.permute.xlu0 %455
        %457 = vrot.lane.b32.xlu0 %v232, 1
        %v458 = vpop.permute.xlu0 %457
        %459 = vrot.lane.b32.xlu0 %v235, 1
        %v460 = vpop.permute.xlu0 %459
        %461 = vrot.lane.b32.xlu0 %v233, 1
        %v462 = vpop.permute.xlu0 %461
        %463 = vrot.lane.b32.xlu0 %v236, 1
        %v464 = vpop.permute.xlu0 %463
        %vm465 = vcmp.lt.s32.totalorder %v238, 1
        %v466 = vsel %vm465, %v458, %v462
        %v467 = vsel %vm465, %v460, %v464
        %v468 = vsel %vm465, %v454, %v458
        %v469 = vsel %vm465, %v456, %v460
        %v470 = vsel %vm465, %v462, %v454
        %v471 = vsel %vm465, %v464, %v456
        %v472 = vmul.f32 %v470, %v375
        %v473 = vmul.f32 %v468, %v376
        %v474 = vmul.f32 %v466, %v377
        %v475 = vmul.f32 %v471, %v375
        %v476 = vmul.f32 %v469, %v376
        %v477 = vmul.f32 %v467, %v377
        %v478 = vadd.f32 %v447, %v472
        %v479 = vadd.f32 %v448, %v473
        %v480 = vadd.f32 %v449, %v474
        %v481 = vadd.f32 %v450, %v475
        %v482 = vadd.f32 %v451, %v476
        %v483 = vadd.f32 %v452, %v477
        %484 = vrot.lane.b32.xlu0 %v231, 2
        %v485 = vpop.permute.xlu0 %484
        %486 = vrot.lane.b32.xlu0 %v234, 2
        %v487 = vpop.permute.xlu0 %486
        %488 = vrot.lane.b32.xlu0 %v232, 2
        %v489 = vpop.permute.xlu0 %488
        %490 = vrot.lane.b32.xlu0 %v235, 2
        %v491 = vpop.permute.xlu0 %490
        %492 = vrot.lane.b32.xlu0 %v233, 2
        %v493 = vpop.permute.xlu0 %492
        %494 = vrot.lane.b32.xlu0 %v236, 2
        %v495 = vpop.permute.xlu0 %494
        %vm496 = vcmp.lt.s32.totalorder %v238, 2
        %v497 = vsel %vm496, %v489, %v493
        %v498 = vsel %vm496, %v491, %v495
        %v499 = vsel %vm496, %v485, %v489
        %v500 = vsel %vm496, %v487, %v491
        %v501 = vsel %vm496, %v493, %v485
        %v502 = vsel %vm496, %v495, %v487
        %v503 = vmul.f32 %v501, %v382
        %v504 = vmul.f32 %v499, %v383
        %v505 = vmul.f32 %v497, %v384
        %v506 = vmul.f32 %v502, %v382
        %v507 = vmul.f32 %v500, %v383
        %v508 = vmul.f32 %v498, %v384
        %v509 = vadd.f32 %v478, %v503
        %v510 = vadd.f32 %v479, %v504
        %v511 = vadd.f32 %v480, %v505
        %v512 = vadd.f32 %v481, %v506
        %v513 = vadd.f32 %v482, %v507
        %v514 = vadd.f32 %v483, %v508
        %515 = vst [vmem:[%s205] sm:$0xff] %v509
        %516 = vst [vmem:[%s205 + $0x8] sm:$0xff] %v510
        %517 = vst [vmem:[%s205 + $0x10] sm:$0xff] %v511
        %518 = vst [vmem:[%s205 + $0x18] sm:$0xff] %v512
        %519 = vst [vmem:[%s205 + $0x20] sm:$0xff] %v513
        %520 = vst [vmem:[%s205 + $0x28] sm:$0xff] %v514
        %s521 = sand.u32 %s100, 1
        %s522 = scalar_lea.sflag [#allocation6], %s521
        %s523 = sand.u32 %s100, 1
        %s524 = smul.addr %s523, 48
        %s525 = scalar_lea.vmem [#allocation9], %s524
        // Predicated region
        $region37: #{tpu_custom_call.1} parent=27 // pred_check
          %p526 = pneg %p110
        $region38: #{tpu_custom_call.1} parent=27 // pred_check_branch
          %528 = sbr.rel (%p526) target = $region40
        $region39: #{tpu_custom_call.1} parent=27 // pred_region
          %s529 = smul.u32 2, %s34
          %531 = vsyncadd %s522, 0
          %s532 = smul.addr %s529, 3
          %s533 = smul.addr %s33, 6
          %s534 = sadd.s32 %s532, %s533
          %s535 = smul.addr %s534, 8
          %s536 = scalar_lea.hbm %s3, %s535
          %s537 = sshll.u32 %s525, 4
          %s538 = int_to_ptr.vmem [resolvable:$true] %s537
          %s539 = sshll.u32 %s536, 4
          %s540 = int_to_ptr.hbm [resolvable:$true] %s539
          %545 = dma.vmem_to_hbm [thread:$0]  %s538, 768, %s540, %s522, 384, 384, 24
        $region40: #{tpu_custom_call.1} parent=27 // pred_fallthru
          _
      $region28: #{tpu_custom_call.1} parent=5 // pred_fallthru
        _
      %p546 = scmp.le.s32.totalorder 2, %s24
      // Predicated region
      $region41: #{tpu_custom_call.1} parent=5 // pred_check
        %p547 = pneg %p546
      $region42: #{tpu_custom_call.1} parent=5 // pred_check_branch
        %549 = sbr.rel (%p547) target = $region44
      $region43: #{tpu_custom_call.1} parent=5 // pred_region
        %s550 = ssub.s32 %s24, 2
        // Predicated region
        $region45: #{tpu_custom_call.1} parent=43 // pred_check
          %p551 = pneg %p116
        $region46: #{tpu_custom_call.1} parent=43 // pred_check_branch
          %553 = sbr.rel (%p551) target = $region48
        $region47: #{tpu_custom_call.1} parent=43 // pred_region
          %s554 = sand.u32 %s101, 1
          %s555 = scalar_lea.sflag [#allocation6], %s554
          %s556 = sand.u32 %s101, 1
          %s557 = smul.addr %s556, 48
          %s558 = scalar_lea.vmem [#allocation9], %s557
          %560 = dma.done %s555, 768
        $region48: #{tpu_custom_call.1} parent=43 // pred_fallthru
          _
      $region44: #{tpu_custom_call.1} parent=5 // pred_fallthru
        _
    $region6: #{tpu_custom_call.1} parent=1 // loop_footer
      %s28 = sadd.s32 1, %s24
    $region7: #{tpu_custom_call.1} parent=1 // loop_footer_branch
      %23 = sbr.rel target = $region3
    $region8: #{tpu_custom_call.1} parent=1 // loop_exit
      _
    %561 = vsyncpa [#allocation5], 1
    %s562 = scalar_lea.sflag [#allocation5], 1
    %563 = vsyncpa %s562, 1
    %564 = vsyncpa [#allocation6], 1
    %s565 = scalar_lea.sflag [#allocation6], 1
    %566 = vsyncpa %s565, 1
    %567 = vsyncpa [#allocation7], 1
    %s568 = scalar_lea.sflag [#allocation7], 1
    %569 = vsyncpa %s568, 1

</llo_original>
